<compile_context>
chip_gen: v7x
topology: tpu7x:2x2x1
jax: 0.10.0
libtpu: 0.0.40
codegen_flags: <defaults>
</compile_context>

<pallas_src>
import jax
import jax.numpy as jnp
from jax.experimental import pallas as pl
from jax.experimental.pallas import tpu as pltpu


def _fused_linear_kernel(x_ref, w_ref, b_ref, o_ref):
    # x_ref : (TM, 64)   streamed token tile (f32 or bf16)
    # w_ref : (64, 128)  fused weight W1^T @ W2^T, grid-invariant (VMEM-resident)
    # b_ref : (1, 128)   fused bias b1 @ W2^T + b2, f32, grid-invariant
    # o_ref : (TM, 128)  output tile (f32 or bf16)
    z = jnp.dot(x_ref[...], w_ref[...], preferred_element_type=jnp.float32)
    z = z + b_ref[...]                   # f32 epilogue on the VPU
    o_ref[...] = z.astype(o_ref.dtype)   # cast only at the final store


def my_attention(x, w1, b1, w2, b2, *, out_dtype=None, tm=4096,
                 vmem_limit_bytes=None):
    """Fused q_proj(64->128) + out_proj(128->128) forward.

    x  : (batch, seq, 64), f32 or bf16 (MXU operand dtype follows x.dtype).
    w1 : (128, 64), b1 : (128,)   -- torch nn.Linear layout (out, in)
    w2 : (128, 128), b2 : (128,)
    out_dtype : output dtype; default x.dtype. Pass jnp.bfloat16 if downstream
                accepts it — it halves the dominant output HBM stream.
    tm : token rows per grid step (multiple of 8). 4096 is safe on all of
         v5e/v6e/v7x; 8192 is fine on v6e/v7x (raise vmem_limit_bytes beyond
         that). At large M keep m/tm >= 2 (ideally >= 8) so the "parallel" axis
         feeds both v7x TensorCores.
    """
    batch, seq, d_in = x.shape
    d_hidden, d_in_w = w1.shape      # (128, 64)
    d_out, d_hidden_w = w2.shape     # (128, 128)
    assert d_in == d_in_w and d_hidden == d_hidden_w

    compute_dtype = x.dtype          # no wrapper-side astype pass over x
    if out_dtype is None:
        out_dtype = x.dtype

    # ---- Algebraic fusion of the two affine layers (tiny, done once, in f32) ----
    w1_f = w1.astype(jnp.float32)
    w2_f = w2.astype(jnp.float32)
    w_fused = jnp.dot(w1_f.T, w2_f.T).astype(compute_dtype)          # (64, 128)
    b_fused = (jnp.dot(b1.astype(jnp.float32), w2_f.T)
               + b2.astype(jnp.float32)).reshape(1, d_out)           # (1, 128) f32

    # ---- Flatten tokens; tile M with a masked overhanging last block ----
    m = batch * seq
    x2d = x.reshape(m, d_in)

    # Single full-extent block for tiny M (block == array dims satisfies the
    # (8,128) rule); otherwise stream tm-row tiles and let Pallas mask the
    # out-of-bounds rows of the final block. No pad / slice HBM copies.
    tm_eff = m if m <= tm else tm
    grid = (pl.cdiv(m, tm_eff),)

    x_bytes = jnp.dtype(compute_dtype).itemsize
    o_bytes = jnp.dtype(out_dtype).itemsize
    cost = pl.CostEstimate(
        flops=2 * m * d_in * d_out,
        transcendentals=0,
        bytes_accessed=(m * d_in * x_bytes          # x
                        + d_in * d_out * x_bytes    # fused weight
                        + d_out * 4                 # fused bias (f32)
                        + m * d_out * o_bytes),     # output
    )

    compiler_params = pltpu.CompilerParams(
        dimension_semantics=("parallel",),           # shard grid steps across TCs
        vmem_limit_bytes=vmem_limit_bytes,
    )

    out2d = pl.pallas_call(
        _fused_linear_kernel,
        out_shape=jax.ShapeDtypeStruct((m, d_out), out_dtype),
        grid=grid,
        in_specs=[
            pl.BlockSpec((tm_eff, d_in), lambda i: (i, 0)),   # streamed x tile
            pl.BlockSpec((d_in, d_out), lambda i: (0, 0)),    # resident fused weight
            pl.BlockSpec((1, d_out), lambda i: (0, 0)),       # resident fused bias
        ],
        out_specs=pl.BlockSpec((tm_eff, d_out), lambda i: (i, 0)),
        compiler_params=compiler_params,
        cost_estimate=cost,
    )(x2d, w_fused, b_fused)

    return out2d.reshape(batch, seq, d_out)


def _init_linear_params(key, out_features, in_features):
    """Deterministic init mimicking torch.nn.Linear default (uniform +/- 1/sqrt(in))."""
    kw, kb = jax.random.split(key)
    bound = 1.0 / (in_features ** 0.5)
    w = jax.random.uniform(kw, (out_features, in_features),
                           minval=-bound, maxval=bound, dtype=jnp.float32)
    b = jax.random.uniform(kb, (out_features,),
                           minval=-bound, maxval=bound, dtype=jnp.float32)
    return w, b


if __name__ == "__main__":
    key = jax.random.PRNGKey(0)
    k_x, k_q, k_o, k_x2 = jax.random.split(key, 4)

    # q_proj: Linear(64, 128); out_proj: Linear(128, 128)
    w1, b1 = _init_linear_params(k_q, 128, 64)
    w2, b2 = _init_linear_params(k_o, 128, 128)

    # ---- Small demo shape, single full-extent block ----
    batch, seq, d_in = 2, 8, 64
    x = jax.random.normal(k_x, (batch, seq, d_in), dtype=jnp.float32)
    ref = (x @ w1.T + b1) @ w2.T + b2

    z32 = my_attention(x, w1, b1, w2, b2)
    jax.block_until_ready(z32)
    assert z32.shape == (batch, seq, 128) and z32.dtype == jnp.float32
    assert jnp.allclose(z32, ref, atol=1e-4, rtol=1e-4), "f32 path mismatch"

    # ---- Non-multiple M with small tm: exercises the masked overhanging block ----
    b2_, s2_ = 3, 70                               # m = 210, tm = 64 -> grid = 4
    x_odd = jax.random.normal(k_x2, (b2_, s2_, d_in), dtype=jnp.float32)
    ref_odd = (x_odd @ w1.T + b1) @ w2.T + b2
    z_odd = my_attention(x_odd, w1, b1, w2, b2, tm=64)
    jax.block_until_ready(z_odd)
    assert z_odd.shape == (b2_, s2_, 128)
    assert jnp.allclose(z_odd, ref_odd, atol=1e-4, rtol=1e-4), "overhang-block mismatch"

    # ---- bf16 operand + bf16 output path (x already stored in bf16; no wrapper cast) ----
    x_bf = x.astype(jnp.bfloat16)
    z_bf = my_attention(x_bf, w1, b1, w2, b2, out_dtype=jnp.bfloat16)
    jax.block_until_ready(z_bf)
    assert z_bf.shape == (batch, seq, 128) and z_bf.dtype == jnp.bfloat16
    assert jnp.allclose(z_bf.astype(jnp.float32), ref, atol=5e-2, rtol=5e-2), \
        "bf16 path mismatch"

    print("KERNEL_OK")
</pallas_src>

<mosaic_0001>
module attributes {stable_mosaic.version = 11 : i64} {
  func.func @_fused_linear_kernel(%arg0: i32, %arg1: memref<16x64xf32, #tpu.memory_space<vmem>>, %arg2: memref<64x128xf32, #tpu.memory_space<vmem>>, %arg3: memref<1x128xf32, #tpu.memory_space<vmem>>, %arg4: memref<16x128xf32, #tpu.memory_space<vmem>>) attributes {dimension_semantics = [#tpu.dimension_semantics<parallel>], iteration_bounds = array<i64: 1>, scalar_prefetch = 0 : i64, scratch_operands = 0 : i64, tpu.core_type = #tpu.core_type<tc>, window_params = [{transform_indices = @transform_0, window_bounds = array<i64: 16, 64>}, {pipeline_mode = #tpu.pipeline_mode<synchronous>, transform_indices = @transform_1, window_bounds = array<i64: 64, 128>}, {pipeline_mode = #tpu.pipeline_mode<synchronous>, transform_indices = @transform_2, window_bounds = array<i64: 1, 128>}, {transform_indices = @transform_3, window_bounds = array<i64: 16, 128>}]} {
    %c0 = arith.constant 0 : index
    %c0_0 = arith.constant 0 : index
    %0 = vector.load %arg1[%c0, %c0_0] : memref<16x64xf32, #tpu.memory_space<vmem>>, vector<16x64xf32>
    %c0_1 = arith.constant 0 : index
    %c0_2 = arith.constant 0 : index
    %1 = vector.load %arg2[%c0_1, %c0_2] : memref<64x128xf32, #tpu.memory_space<vmem>>, vector<64x128xf32>
    %cst = arith.constant dense<0.000000e+00> : vector<16x128xf32>
    %2 = tpu.matmul %0, %1, %cst {dimension_numbers = #tpu.dot_dimension_numbers<[1], [0], [0], [1], [0, 0, 1, 1], [], []>} : vector<16x64xf32>, vector<64x128xf32>, vector<16x128xf32> -> vector<16x128xf32>
    %c0_3 = arith.constant 0 : index
    %c0_4 = arith.constant 0 : index
    %3 = vector.load %arg3[%c0_3, %c0_4] : memref<1x128xf32, #tpu.memory_space<vmem>>, vector<1x128xf32>
    %4 = vector.broadcast %3 : vector<1x128xf32> to vector<16x128xf32>
    %5 = arith.addf %2, %4 : vector<16x128xf32>
    %c0_5 = arith.constant 0 : index
    %c0_6 = arith.constant 0 : index
    %6 = vector.load %arg4[%c0_5, %c0_6] : memref<16x128xf32, #tpu.memory_space<vmem>>, vector<16x128xf32>
    tpu.vector_store %arg4[%c0_5, %c0_6], %5 {strides = array<i32>} : memref<16x128xf32, #tpu.memory_space<vmem>>, vector<16x128xf32>,
    return
  }
  func.func @transform_0(%arg0: i32) -> (i32, i32) {
    %c0_i32 = arith.constant 0 : i32
    %c0_i32_0 = arith.constant 0 : i32
    return %arg0, %c0_i32 : i32, i32
  }
  func.func @transform_1(%arg0: i32) -> (i32, i32) {
    %c0_i32 = arith.constant 0 : i32
    %c0_i32_0 = arith.constant 0 : i32
    %c0_i32_1 = arith.constant 0 : i32
    return %c0_i32, %c0_i32_0 : i32, i32
  }
  func.func @transform_2(%arg0: i32) -> (i32, i32) {
    %c0_i32 = arith.constant 0 : i32
    %c0_i32_0 = arith.constant 0 : i32
    %c0_i32_1 = arith.constant 0 : i32
    return %c0_i32, %c0_i32_0 : i32, i32
  }
  func.func @transform_3(%arg0: i32) -> (i32, i32) {
    %c0_i32 = arith.constant 0 : i32
    %c0_i32_0 = arith.constant 0 : i32
    return %arg0, %c0_i32 : i32, i32
  }
}

</mosaic_0001>

<llo_original>
// kernel: tpu_custom_call.1
$region0: #{tpu_custom_call.1}
  #allocation0 [shape = 'u32[]', space=smem, size = 0x4, offset = 0x4, fixed_abs, tag = 'smem constant byte address 0x4 - core index']
  #allocation1 [shape = 'u32[144,128]{1,0:T(1,128)}', space=vmem, size = 0x12000, scoped, tag = 'internal scratch']
  %s0 = inlined_call_operand.hbm [shape: f32[16,64], index: 0, kind: input, shape index: {}]
  %s1 = inlined_call_operand.hbm [shape: f32[64,128], index: 1, kind: input, shape index: {}]
  %s2 = inlined_call_operand.vmem [shape: f32[1,128], index: 2, kind: input, shape index: {}]
  %s3 = inlined_call_operand.hbm [shape: f32[16,128], index: 3, kind: output, shape index: {}]
  %s4 = sld [smem:[#allocation0]]
  $region30: #{tpu_custom_call.1} parent=0
    _
  %s6 = ssub.s32 1, %s4
  %s7 = scalar_select 0, %s6, %s4
  $region1: #{tpu_custom_call.1} parent=0
    #allocation2 [shape = 'u8[8192]{0}', space=vmem, size = 0x2000, scoped, tag = 'input window, operand 0, single buffered']
    #allocation3 [shape = 's32[1]{0}', space=sflag, size = 0x4, scoped, tag = 'scoped memory for tpu_custom_call.1']
    #allocation4 [shape = 's32[1]{0}', space=sflag, size = 0x4, scoped, tag = 'scoped memory for tpu_custom_call.1']
    #allocation5 [shape = 'u8[32768]{0}', space=vmem, size = 0x8000, scoped, tag = 'input window, operand 1, single buffered']
    #allocation6 [shape = 's32[1]{0}', space=sflag, size = 0x4, scoped, tag = 'scoped memory for tpu_custom_call.1']
    #allocation7 [shape = 'u8[8192]{0}', space=vmem, size = 0x2000, scoped, tag = 'output window, operand 0, single buffered']
    %8 = vsyncpa [#allocation3], 0
    %9 = vsyncpa [#allocation6], 0
    %10 = vsyncpa [#allocation4], 0
    // Predicated region
    $region2: #{tpu_custom_call.1} parent=1 // pred_check
      _
    $region3: #{tpu_custom_call.1} parent=1 // pred_check_branch
      %12 = sbr.rel (0) target = $region5
    $region4: #{tpu_custom_call.1} parent=1 // pred_region
      %s14 = ssub.s32 256, 256
      %15 = vsyncadd [#allocation3], %s14
      %s16 = sshll.u32 [#allocation2], 4
      %s17 = int_to_ptr.vmem [resolvable:$true] %s16
      %22 = dma.hbm_to_vmem [thread:$0]  %s0, 256, %s17, [#allocation3], 128, 128, 8
    $region5: #{tpu_custom_call.1} parent=1 // pred_fallthru
      _
    // Predicated region
    $region6: #{tpu_custom_call.1} parent=1 // pred_check
      _
    $region7: #{tpu_custom_call.1} parent=1 // pred_check_branch
      %24 = sbr.rel (0) target = $region9
    $region8: #{tpu_custom_call.1} parent=1 // pred_region
      %s26 = ssub.s32 1024, 1024
      %27 = vsyncadd [#allocation6], %s26
      %s28 = sshll.u32 [#allocation5], 4
      %s29 = int_to_ptr.vmem [resolvable:$true] %s28
      %34 = dma.hbm_to_vmem [thread:$0]  %s1, 1024, %s29, [#allocation6], 128, 128, 8
    $region9: #{tpu_custom_call.1} parent=1 // pred_fallthru
      _
    // Predicated region
    $region10: #{tpu_custom_call.1} parent=1 // pred_check
      _
    $region11: #{tpu_custom_call.1} parent=1 // pred_check_branch
      %36 = sbr.rel (0) target = $region13
    $region12: #{tpu_custom_call.1} parent=1 // pred_region
      _
    $region13: #{tpu_custom_call.1} parent=1 // pred_fallthru
      _
    // Predicated region
    $region14: #{tpu_custom_call.1} parent=1 // pred_check
      _
    $region15: #{tpu_custom_call.1} parent=1 // pred_check_branch
      %38 = sbr.rel (0) target = $region17
    $region16: #{tpu_custom_call.1} parent=1 // pred_region
      %39 = dma.done [#allocation3], 256
    $region17: #{tpu_custom_call.1} parent=1 // pred_fallthru
      _
    // Predicated region
    $region18: #{tpu_custom_call.1} parent=1 // pred_check
      _
    $region19: #{tpu_custom_call.1} parent=1 // pred_check_branch
      %41 = sbr.rel (0) target = $region21
    $region20: #{tpu_custom_call.1} parent=1 // pred_region
      %42 = dma.done [#allocation6], 1024
    $region21: #{tpu_custom_call.1} parent=1 // pred_fallthru
      _
    %v43 = vld [vmem:[#allocation2] sm:$0xff]
    %v44 = vld [vmem:[#allocation2 + $0x8] sm:$0xff]
    %v45 = vld [vmem:[#allocation5] sm:$0xff]
    %v46 = vld [vmem:[#allocation5 + $0x8] sm:$0xff]
    %v47 = vld [vmem:[#allocation5 + $0x10] sm:$0xff]
    %v48 = vld [vmem:[#allocation5 + $0x18] sm:$0xff]
    %v49 = vld [vmem:[#allocation5 + $0x20] sm:$0xff]
    %v50 = vld [vmem:[#allocation5 + $0x28] sm:$0xff]
    %v51 = vld [vmem:[#allocation5 + $0x30] sm:$0xff]
    %v52 = vld [vmem:[#allocation5 + $0x38] sm:$0xff]
    %v53 = vld [vmem:[%s2] sm:$0x1]
    %v55 = vlaneseq
    %v56 = vshrl.u32 %v55, 7
    %v57 = vsub.s32 0, %v56
    %v58 = vrot.slane %v53, %v57
    %vm60 = vcmask 523264
    %v62 = vsel %vm60, %v43, 0
    %v65 = vsel %vm60, %v44, 0
    %67 = vmatprep.subr.mxu0 0.0
    %68 = vmatpush1.msra.mxu0 %v45
    %69 = vmatprep.subr.mxu0 0.0
    %70 = vmatpush1.msra.mxu0 %v46
    %71 = vmatprep.subr.mxu0 0.0
    %72 = vmatpush1.msra.mxu0 %v47
    %73 = vmatprep.subr.mxu0 0.0
    %74 = vmatpush1.msra.mxu0 %v48
    %75 = vmatprep.subr.mxu0 0.0
    %76 = vmatpush1.msra.mxu0 %v49
    %77 = vmatprep.subr.mxu0 0.0
    %78 = vmatpush1.msra.mxu0 %v50
    %79 = vmatprep.subr.mxu0 0.0
    %80 = vmatpush1.msra.mxu0 %v51
    %81 = vmatprep.subr.mxu0 0.0
    %82 = vmatpush1.msra.mxu0 %v52
    %83 = vmatprep.subr.mxu0 0.0
    %84 = vmatpush1.msra.mxu0 0.0
    %85 = vmatprep.subr.mxu0 0.0
    %86 = vmatpush1.msra.mxu0 0.0
    %87 = vmatprep.subr.mxu0 0.0
    %88 = vmatpush1.msra.mxu0 0.0
    %89 = vmatprep.subr.mxu0 0.0
    %90 = vmatpush1.msra.mxu0 0.0
    %91 = vmatprep.subr.mxu0 0.0
    %92 = vmatpush1.msra.mxu0 0.0
    %93 = vmatprep.subr.mxu0 0.0
    %94 = vmatpush1.msra.mxu0 0.0
    %95 = vmatprep.subr.mxu0 0.0
    %96 = vmatpush1.msra.mxu0 0.0
    %97 = vmatprep.subr.mxu0 0.0
    %98 = vmatpush1.msra.mxu0 0.0
    %99 = vmatprep.subr.mxu0 0.0
    %100 = vmatpush1.msra.mxu0 0.0
    %101 = vmatprep.subr.mxu0 0.0
    %102 = vmatpush1.msra.mxu0 0.0
    %103 = vmatprep.subr.mxu0 0.0
    %104 = vmatpush1.msra.mxu0 0.0
    %105 = vmatprep.subr.mxu0 0.0
    %106 = vmatpush1.msra.mxu0 0.0
    %107 = vmatprep.subr.mxu0 0.0
    %108 = vmatpush1.msra.mxu0 0.0
    %109 = vmatprep.subr.mxu0 0.0
    %110 = vmatpush1.msra.mxu0 0.0
    %111 = vmatprep.subr.mxu0 0.0
    %112 = vmatpush1.msra.mxu0 0.0
    %113 = vmatprep.subr.mxu0 0.0
    %114 = vmatpush1.msra.mxu0 0.0
    %115 = vmatprep.subr.mxu0 0.0
    %116 = vmatpush1.msra.mxu0 0.0
    %117 = vmatprep.subr.mxu0 0.0
    %118 = vmatpush1.msra.mxu0 0.0
    %119 = vmatprep.subr.mxu0 0.0
    %120 = vmatpush1.msra.mxu0 0.0
    %121 = vmatprep.subr.mxu0 0.0
    %122 = vmatpush1.msra.mxu0 0.0
    %123 = vmatprep.subr.mxu0 0.0
    %124 = vmatpush1.msra.mxu0 0.0
    %125 = vmatprep.subr.mxu0 0.0
    %126 = vmatpush1.msra.mxu0 0.0
    %127 = vmatprep.subr.mxu0 0.0
    %128 = vmatpush1.msra.mxu0 0.0
    %129 = vmatprep.subr.mxu0 0.0
    %130 = vmatpush1.msra.mxu0 0.0
    %131 = vmatprep.mubr.f32.mxu0 0.0
    %132 = vmatmul.mubr.f32.gmra.mrb[0].mxu0 %v62
    %v133 = vpop.f32.mrb[0].mxu0
    %v134 = vadd.f32 %v58, %v133
    %v135 = vpop.f32.mrb[0].mxu0
    %136 = vmatprep.mubr.f32.mxu0 0.0
    %137 = vmatmul.mubr.f32.gmra.mrb[0].mxu0 %v65
    %v138 = vpop.f32.mrb[0].mxu0
    %v139 = vadd.f32 %v58, %v138
    %v140 = vpop.f32.mrb[0].mxu0
    %141 = vdwg.mxu0
    %142 = vst [vmem:[#allocation7] sm:$0xff] %v134
    %143 = vst [vmem:[#allocation7 + $0x8] sm:$0xff] %v139
    // Predicated region
    $region22: #{tpu_custom_call.1} parent=1 // pred_check
      _
    $region23: #{tpu_custom_call.1} parent=1 // pred_check_branch
      %145 = sbr.rel (0) target = $region25
    $region24: #{tpu_custom_call.1} parent=1 // pred_region
      %s147 = ssub.s32 256, 256
      %148 = vsyncadd [#allocation4], %s147
      %s149 = sshll.u32 [#allocation7], 4
      %s150 = int_to_ptr.vmem [resolvable:$true] %s149
      %155 = dma.vmem_to_hbm [thread:$0]  %s150, 256, %s3, [#allocation4], 128, 128, 8
    $region25: #{tpu_custom_call.1} parent=1 // pred_fallthru
      _
    // Predicated region
    $region26: #{tpu_custom_call.1} parent=1 // pred_check
      _
    $region27: #{tpu_custom_call.1} parent=1 // pred_check_branch
      %157 = sbr.rel (0) target = $region29
    $region28: #{tpu_custom_call.1} parent=1 // pred_region
      %158 = dma.done [#allocation4], 256
    $region29: #{tpu_custom_call.1} parent=1 // pred_fallthru
      _
    %159 = vsyncpa [#allocation3], 1
    %160 = vsyncpa [#allocation6], 1
    %161 = vsyncpa [#allocation4], 1

</llo_original>
